<compile_context>
chip_gen: v5e
topology: v5e:2x2
jax: 0.10.0
libtpu: 0.0.40
codegen_flags: <defaults>
</compile_context>

<pallas_src>
import functools

import jax
import jax.numpy as jnp
from jax.experimental import pallas as pl
from jax.experimental.pallas import tpu as pltpu


def _spatial_attention_kernel(w_ref, coords_ref, x_ref, o_ref,
                              sum_ref, max_ref, *, H, W, K, C, c_chunk):
    # w_ref     : SMEM (2*K*K,) f32      -- conv weight, flattened [c_in, kh, kw]
    # coords_ref: VMEM (2, H*W) int32    -- row 0: h index, row 1: w index
    # x_ref     : VMEM (1, c_chunk, H*W) -- one batch element, one channel chunk
    # o_ref     : VMEM (1, 1, H*W)
    # sum_ref   : VMEM (1, H*W) f32      -- running channel sum (persists over chunks)
    # max_ref   : VMEM (1, H*W) f32      -- running channel max
    HW = H * W
    P = (K - 1) // 2
    ci = pl.program_id(1)
    n_chunks = pl.num_programs(1)

    @pl.when(ci == 0)
    def _init():
        sum_ref[...] = jnp.zeros_like(sum_ref)
        max_ref[...] = jnp.full_like(max_ref, -jnp.inf)

    # ---- streamed channel reduction (sum + running max), f32 accumulation ----
    c_base = ci * c_chunk
    needs_mask = (C % c_chunk) != 0   # last chunk may contain padded channels

    def body(c, carry):
        s, m = carry
        xc = x_ref[0, pl.ds(c, 1), :].astype(jnp.float32)        # (1, HW)
        if needs_mask:
            valid = (c_base + c) < C
            s = s + jnp.where(valid, xc, 0.0)
            m = jnp.maximum(m, jnp.where(valid, xc, -jnp.inf))
        else:
            s = s + xc
            m = jnp.maximum(m, xc)
        return s, m

    s, m = jax.lax.fori_loop(0, c_chunk, body,
                             (sum_ref[...], max_ref[...]),
                             unroll=(c_chunk <= 32))
    sum_ref[...] = s
    max_ref[...] = m

    # ---- last channel chunk: KxK conv via roll+mask taps, then sigmoid ----
    @pl.when(ci == n_chunks - 1)
    def _finalize():
        avg = sum_ref[...] * jnp.float32(1.0 / C)                # (1, HW)
        mx = max_ref[...]                                        # (1, HW)
        coords = coords_ref[...]
        h_idx = coords[0:1, :]                                   # (1, HW) int32
        w_idx = coords[1:2, :]                                   # (1, HW) int32

        acc = jnp.zeros((1, HW), jnp.float32)
        for kh in range(K):
            for kw in range(K):
                dh = kh - P
                dw = kw - P
                d = dh * W + dw                  # flat offset of this tap
                if d == 0:
                    a_sh, m_sh = avg, mx
                else:
                    shift = (-d) % HW            # out[i] uses in[i + d]
                    a_sh = pltpu.roll(avg, shift, axis=1)
                    m_sh = pltpu.roll(mx, shift, axis=1)
                w_a = w_ref[0 * K * K + kh * K + kw]
                w_m = w_ref[1 * K * K + kh * K + kw]
                contrib = w_a * a_sh + w_m * m_sh
                # zero 'SAME' padding: kill taps that fall outside the image
                # (both the W-edge row-wrap and the H-edge array-wrap).
                valid = ((h_idx >= -dh) & (h_idx < H - dh) &
                         (w_idx >= -dw) & (w_idx < W - dw))
                acc = acc + jnp.where(valid, contrib, 0.0)

        o_ref[0] = jax.nn.sigmoid(acc).astype(o_ref.dtype)


def spatial_attention(x, weight, *, kernel_size=3,
                      vmem_block_bytes=4 * 1024 * 1024):
    """x: (N, C, H, W); weight: (1, 2, K, K) conv weight (no bias).

    Returns sigmoid(conv2d(concat([mean_c(x), max_c(x)], dim=1))) of shape
    (N, 1, H, W), matching the PyTorch SpatialAttention module.
    """
    assert kernel_size in (3, 5, 7), "kernel size must be 3 5 7"
    N, C, H, W = x.shape
    K = kernel_size
    HW = H * W

    # Channel chunk: whole C if it fits the budget, otherwise the largest
    # multiple of 8 that does (keeps the block (8,128)-legal and v7x-VMEM-safe).
    bytes_per_channel = HW * jnp.dtype(x.dtype).itemsize
    if C * bytes_per_channel <= vmem_block_bytes:
        c_chunk = C
    else:
        c_chunk = max(8, (vmem_block_bytes // bytes_per_channel) // 8 * 8)
        c_chunk = min(c_chunk, C)
    n_chunks = (C + c_chunk - 1) // c_chunk

    x_flat = x.reshape(N, C, HW)                         # lane-dense spatial axis
    w_flat = weight.reshape(-1).astype(jnp.float32)      # (2*K*K,)

    # Per-pixel (h, w) indices for the conv boundary masks (avoids in-kernel
    # integer div/mod).
    hh, ww = jnp.meshgrid(jnp.arange(H, dtype=jnp.int32),
                          jnp.arange(W, dtype=jnp.int32), indexing="ij")
    coords = jnp.stack([hh.reshape(-1), ww.reshape(-1)], axis=0)   # (2, HW)

    kernel = functools.partial(_spatial_attention_kernel,
                               H=H, W=W, K=K, C=C, c_chunk=c_chunk)

    out = pl.pallas_call(
        kernel,
        out_shape=jax.ShapeDtypeStruct((N, 1, HW), x.dtype),
        grid_spec=pltpu.PrefetchScalarGridSpec(
            num_scalar_prefetch=0,
            grid=(N, n_chunks),
            in_specs=[
                pl.BlockSpec(memory_space=pltpu.MemorySpace.SMEM),        # weights
                pl.BlockSpec((2, HW), lambda n, c: (0, 0)),               # coords
                pl.BlockSpec((1, c_chunk, HW), lambda n, c: (n, c, 0)),   # input
            ],
            out_specs=pl.BlockSpec((1, 1, HW), lambda n, c: (n, 0, 0)),
            scratch_shapes=[
                pltpu.VMEM((1, HW), jnp.float32),   # channel-sum accumulator
                pltpu.VMEM((1, HW), jnp.float32),   # channel-max accumulator
            ],
        ),
        compiler_params=pltpu.CompilerParams(
            dimension_semantics=("parallel", "arbitrary"),
            vmem_limit_bytes=48 * 1024 * 1024,
        ),
    )(w_flat, coords, x_flat)

    return out.reshape(N, 1, H, W)


def _reference(x, weight):
    # Pure-JAX reference of the PyTorch forward pass.
    avg = jnp.mean(x, axis=1, keepdims=True)
    mx = jnp.max(x, axis=1, keepdims=True)
    cat = jnp.concatenate([avg, mx], axis=1)            # (N, 2, H, W)
    conv = jax.lax.conv_general_dilated(
        cat, weight, window_strides=(1, 1), padding="SAME",
        dimension_numbers=("NCHW", "OIHW", "NCHW"))
    return jax.nn.sigmoid(conv)


if __name__ == "__main__":
    key = jax.random.PRNGKey(0)
    kx, kw = jax.random.split(key)

    N, C, H, W = 2, 4, 16, 16
    kernel_size = 3

    x = jax.random.normal(kx, (N, C, H, W), dtype=jnp.float32)
    # Deterministic conv weight init (Conv2d(2, 1, 3, bias=False) shape).
    fan_in = 2 * kernel_size * kernel_size
    bound = 1.0 / jnp.sqrt(fan_in)
    weight = jax.random.uniform(
        kw, (1, 2, kernel_size, kernel_size),
        minval=-bound, maxval=bound, dtype=jnp.float32)

    out = spatial_attention(x, weight, kernel_size=kernel_size)
    out = jax.block_until_ready(out)

    ref = _reference(x, weight)
    assert out.shape == (N, 1, H, W), out.shape
    assert jnp.allclose(out, ref, atol=1e-5, rtol=1e-5), (
        float(jnp.max(jnp.abs(out - ref))))

    print("KERNEL_OK")
</pallas_src>

<mosaic_0001>
module attributes {stable_mosaic.version = 11 : i64} {
  func.func @_spatial_attention_kernel(%arg0: i32, %arg1: i32, %arg2: memref<18xf32, #tpu.memory_space<smem>>, %arg3: memref<2x256xi32, #tpu.memory_space<vmem>>, %arg4: memref<1x4x256xf32, #tpu.memory_space<vmem>>, %arg5: memref<1x1x256xf32, #tpu.memory_space<vmem>>, %arg6: memref<1x256xf32, #tpu.memory_space<vmem>>, %arg7: memref<1x256xf32, #tpu.memory_space<vmem>>) attributes {dimension_semantics = [#tpu.dimension_semantics<parallel>, #tpu.dimension_semantics<arbitrary>], iteration_bounds = array<i64: 2, 1>, scalar_prefetch = 0 : i64, scratch_operands = 2 : i64, tpu.core_type = #tpu.core_type<tc>, window_params = [{transform_indices = @transform_0, window_bounds = array<i64: 18>}, {pipeline_mode = #tpu.pipeline_mode<synchronous>, transform_indices = @transform_1, window_bounds = array<i64: 2, 256>}, {transform_indices = @transform_2, window_bounds = array<i64: 1, 4, 256>}, {transform_indices = @transform_3, window_bounds = array<i64: 1, 1, 256>}]} {
    %c0_i32 = arith.constant 0 : i32
    %0 = arith.cmpi eq, %arg1, %c0_i32 : i32
    %1 = arith.extui %0 : i1 to i32
    %c0_i32_0 = arith.constant 0 : i32
    %2 = arith.cmpi ne, %1, %c0_i32_0 : i32
    scf.if %2 {
      %cst = arith.constant 0.000000e+00 : f32
      %30 = vector.broadcast %cst : f32 to vector<1x256xf32>
      %c0_19 = arith.constant 0 : index
      %c0_20 = arith.constant 0 : index
      %31 = vector.load %arg6[%c0_19, %c0_20] : memref<1x256xf32, #tpu.memory_space<vmem>>, vector<1x256xf32>
      tpu.vector_store %arg6[%c0_19, %c0_20], %30 {strides = array<i32>} : memref<1x256xf32, #tpu.memory_space<vmem>>, vector<1x256xf32>,
      %cst_21 = arith.constant 0xFF800000 : f32
      %32 = vector.broadcast %cst_21 : f32 to vector<1x256xf32>
      %c0_22 = arith.constant 0 : index
      %c0_23 = arith.constant 0 : index
      %33 = vector.load %arg7[%c0_22, %c0_23] : memref<1x256xf32, #tpu.memory_space<vmem>>, vector<1x256xf32>
      tpu.vector_store %arg7[%c0_22, %c0_23], %32 {strides = array<i32>} : memref<1x256xf32, #tpu.memory_space<vmem>>, vector<1x256xf32>,
    } else {
    }
    %c0 = arith.constant 0 : index
    %c0_1 = arith.constant 0 : index
    %3 = vector.load %arg6[%c0, %c0_1] : memref<1x256xf32, #tpu.memory_space<vmem>>, vector<1x256xf32>
    %c0_2 = arith.constant 0 : index
    %c0_3 = arith.constant 0 : index
    %4 = vector.load %arg7[%c0_2, %c0_3] : memref<1x256xf32, #tpu.memory_space<vmem>>, vector<1x256xf32>
    %c0_i32_4 = arith.constant 0 : i32
    %c0_5 = arith.constant 0 : index
    %5 = arith.index_cast %c0_i32_4 : i32 to index
    %c0_6 = arith.constant 0 : index
    %6 = vector.load %arg4[%c0_5, %5, %c0_6] : memref<1x4x256xf32, #tpu.memory_space<vmem>>, vector<1x1x256xf32>
    %7 = vector.shape_cast %6 : vector<1x1x256xf32> to vector<1x256xf32>
    %8 = arith.addf %3, %7 : vector<1x256xf32>
    %9 = arith.maximumf %4, %7 : vector<1x256xf32>
    %c1_i32 = arith.constant 1 : i32
    %c0_7 = arith.constant 0 : index
    %10 = arith.index_cast %c1_i32 : i32 to index
    %c0_8 = arith.constant 0 : index
    %11 = vector.load %arg4[%c0_7, %10, %c0_8] : memref<1x4x256xf32, #tpu.memory_space<vmem>>, vector<1x1x256xf32>
    %12 = vector.shape_cast %11 : vector<1x1x256xf32> to vector<1x256xf32>
    %13 = arith.addf %8, %12 : vector<1x256xf32>
    %14 = arith.maximumf %9, %12 : vector<1x256xf32>
    %c2_i32 = arith.constant 2 : i32
    %c0_9 = arith.constant 0 : index
    %15 = arith.index_cast %c2_i32 : i32 to index
    %c0_10 = arith.constant 0 : index
    %16 = vector.load %arg4[%c0_9, %15, %c0_10] : memref<1x4x256xf32, #tpu.memory_space<vmem>>, vector<1x1x256xf32>
    %17 = vector.shape_cast %16 : vector<1x1x256xf32> to vector<1x256xf32>
    %18 = arith.addf %13, %17 : vector<1x256xf32>
    %19 = arith.maximumf %14, %17 : vector<1x256xf32>
    %c3_i32 = arith.constant 3 : i32
    %c0_11 = arith.constant 0 : index
    %20 = arith.index_cast %c3_i32 : i32 to index
    %c0_12 = arith.constant 0 : index
    %21 = vector.load %arg4[%c0_11, %20, %c0_12] : memref<1x4x256xf32, #tpu.memory_space<vmem>>, vector<1x1x256xf32>
    %22 = vector.shape_cast %21 : vector<1x1x256xf32> to vector<1x256xf32>
    %23 = arith.addf %18, %22 : vector<1x256xf32>
    %24 = arith.maximumf %19, %22 : vector<1x256xf32>
    %c4_i32 = arith.constant 4 : i32
    %c0_13 = arith.constant 0 : index
    %c0_14 = arith.constant 0 : index
    %25 = vector.load %arg6[%c0_13, %c0_14] : memref<1x256xf32, #tpu.memory_space<vmem>>, vector<1x256xf32>
    tpu.vector_store %arg6[%c0_13, %c0_14], %23 {strides = array<i32>} : memref<1x256xf32, #tpu.memory_space<vmem>>, vector<1x256xf32>,
    %c0_15 = arith.constant 0 : index
    %c0_16 = arith.constant 0 : index
    %26 = vector.load %arg7[%c0_15, %c0_16] : memref<1x256xf32, #tpu.memory_space<vmem>>, vector<1x256xf32>
    tpu.vector_store %arg7[%c0_15, %c0_16], %24 {strides = array<i32>} : memref<1x256xf32, #tpu.memory_space<vmem>>, vector<1x256xf32>,
    %c0_i32_17 = arith.constant 0 : i32
    %27 = arith.cmpi eq, %arg1, %c0_i32_17 : i32
    %28 = arith.extui %27 : i1 to i32
    %c0_i32_18 = arith.constant 0 : i32
    %29 = arith.cmpi ne, %28, %c0_i32_18 : i32
    scf.if %29 {
      %c0_19 = arith.constant 0 : index
      %c0_20 = arith.constant 0 : index
      %30 = vector.load %arg6[%c0_19, %c0_20] : memref<1x256xf32, #tpu.memory_space<vmem>>, vector<1x256xf32>
      %cst = arith.constant 2.500000e-01 : f32
      %31 = vector.broadcast %cst : f32 to vector<1x256xf32>
      %32 = arith.mulf %30, %31 : vector<1x256xf32>
      %c0_21 = arith.constant 0 : index
      %c0_22 = arith.constant 0 : index
      %33 = vector.load %arg7[%c0_21, %c0_22] : memref<1x256xf32, #tpu.memory_space<vmem>>, vector<1x256xf32>
      %c0_23 = arith.constant 0 : index
      %c0_24 = arith.constant 0 : index
      %34 = vector.load %arg3[%c0_23, %c0_24] : memref<2x256xi32, #tpu.memory_space<vmem>>, vector<2x256xi32>
      %35 = vector.extract_strided_slice %34 {offsets = [0, 0], sizes = [1, 256], strides = [1, 1]} : vector<2x256xi32> to vector<1x256xi32>
      %36 = vector.extract_strided_slice %34 {offsets = [1, 0], sizes = [1, 256], strides = [1, 1]} : vector<2x256xi32> to vector<1x256xi32>
      %cst_25 = arith.constant 0.000000e+00 : f32
      %37 = vector.broadcast %cst_25 : f32 to vector<1x256xf32>
      %c17_i32 = arith.constant 17 : i32
      %38 = tpu.dynamic_rotate %32 by %c17_i32 dim 1 : vector<1x256xf32>, i32 -> vector<1x256xf32>
      %c17_i32_26 = arith.constant 17 : i32
      %39 = tpu.dynamic_rotate %33 by %c17_i32_26 dim 1 : vector<1x256xf32>, i32 -> vector<1x256xf32>
      %c0_27 = arith.constant 0 : index
      %40 = memref.load %arg2[%c0_27] : memref<18xf32, #tpu.memory_space<smem>>
      %c9 = arith.constant 9 : index
      %41 = memref.load %arg2[%c9] : memref<18xf32, #tpu.memory_space<smem>>
      %42 = vector.broadcast %40 : f32 to vector<1x256xf32>
      %43 = arith.mulf %42, %38 : vector<1x256xf32>
      %44 = vector.broadcast %41 : f32 to vector<1x256xf32>
      %45 = arith.mulf %44, %39 : vector<1x256xf32>
      %46 = arith.addf %43, %45 : vector<1x256xf32>
      %c1_i32_28 = arith.constant 1 : i32
      %47 = vector.broadcast %c1_i32_28 : i32 to vector<1x256xi32>
      %48 = arith.cmpi sge, %35, %47 : vector<1x256xi32>
      %c17_i32_29 = arith.constant 17 : i32
      %49 = vector.broadcast %c17_i32_29 : i32 to vector<1x256xi32>
      %50 = arith.cmpi slt, %35, %49 : vector<1x256xi32>
      %51 = arith.andi %48, %50 : vector<1x256xi1>
      %c1_i32_30 = arith.constant 1 : i32
      %52 = vector.broadcast %c1_i32_30 : i32 to vector<1x256xi32>
      %53 = arith.cmpi sge, %36, %52 : vector<1x256xi32>
      %54 = arith.andi %51, %53 : vector<1x256xi1>
      %c17_i32_31 = arith.constant 17 : i32
      %55 = vector.broadcast %c17_i32_31 : i32 to vector<1x256xi32>
      %56 = arith.cmpi slt, %36, %55 : vector<1x256xi32>
      %57 = arith.andi %54, %56 : vector<1x256xi1>
      %cst_32 = arith.constant 0.000000e+00 : f32
      %58 = vector.broadcast %cst_32 : f32 to vector<1x256xf32>
      %59 = arith.select %57, %46, %58 : vector<1x256xi1>, vector<1x256xf32>
      %60 = arith.addf %37, %59 : vector<1x256xf32>
      %c16_i32 = arith.constant 16 : i32
      %61 = tpu.dynamic_rotate %32 by %c16_i32 dim 1 : vector<1x256xf32>, i32 -> vector<1x256xf32>
      %c16_i32_33 = arith.constant 16 : i32
      %62 = tpu.dynamic_rotate %33 by %c16_i32_33 dim 1 : vector<1x256xf32>, i32 -> vector<1x256xf32>
      %c1 = arith.constant 1 : index
      %63 = memref.load %arg2[%c1] : memref<18xf32, #tpu.memory_space<smem>>
      %c10 = arith.constant 10 : index
      %64 = memref.load %arg2[%c10] : memref<18xf32, #tpu.memory_space<smem>>
      %65 = vector.broadcast %63 : f32 to vector<1x256xf32>
      %66 = arith.mulf %65, %61 : vector<1x256xf32>
      %67 = vector.broadcast %64 : f32 to vector<1x256xf32>
      %68 = arith.mulf %67, %62 : vector<1x256xf32>
      %69 = arith.addf %66, %68 : vector<1x256xf32>
      %c1_i32_34 = arith.constant 1 : i32
      %70 = vector.broadcast %c1_i32_34 : i32 to vector<1x256xi32>
      %71 = arith.cmpi sge, %35, %70 : vector<1x256xi32>
      %c17_i32_35 = arith.constant 17 : i32
      %72 = vector.broadcast %c17_i32_35 : i32 to vector<1x256xi32>
      %73 = arith.cmpi slt, %35, %72 : vector<1x256xi32>
      %74 = arith.andi %71, %73 : vector<1x256xi1>
      %c0_i32_36 = arith.constant 0 : i32
      %75 = vector.broadcast %c0_i32_36 : i32 to vector<1x256xi32>
      %76 = arith.cmpi sge, %36, %75 : vector<1x256xi32>
      %77 = arith.andi %74, %76 : vector<1x256xi1>
      %c16_i32_37 = arith.constant 16 : i32
      %78 = vector.broadcast %c16_i32_37 : i32 to vector<1x256xi32>
      %79 = arith.cmpi slt, %36, %78 : vector<1x256xi32>
      %80 = arith.andi %77, %79 : vector<1x256xi1>
      %cst_38 = arith.constant 0.000000e+00 : f32
      %81 = vector.broadcast %cst_38 : f32 to vector<1x256xf32>
      %82 = arith.select %80, %69, %81 : vector<1x256xi1>, vector<1x256xf32>
      %83 = arith.addf %60, %82 : vector<1x256xf32>
      %c15_i32 = arith.constant 15 : i32
      %84 = tpu.dynamic_rotate %32 by %c15_i32 dim 1 : vector<1x256xf32>, i32 -> vector<1x256xf32>
      %c15_i32_39 = arith.constant 15 : i32
      %85 = tpu.dynamic_rotate %33 by %c15_i32_39 dim 1 : vector<1x256xf32>, i32 -> vector<1x256xf32>
      %c2 = arith.constant 2 : index
      %86 = memref.load %arg2[%c2] : memref<18xf32, #tpu.memory_space<smem>>
      %c11 = arith.constant 11 : index
      %87 = memref.load %arg2[%c11] : memref<18xf32, #tpu.memory_space<smem>>
      %88 = vector.broadcast %86 : f32 to vector<1x256xf32>
      %89 = arith.mulf %88, %84 : vector<1x256xf32>
      %90 = vector.broadcast %87 : f32 to vector<1x256xf32>
      %91 = arith.mulf %90, %85 : vector<1x256xf32>
      %92 = arith.addf %89, %91 : vector<1x256xf32>
      %c1_i32_40 = arith.constant 1 : i32
      %93 = vector.broadcast %c1_i32_40 : i32 to vector<1x256xi32>
      %94 = arith.cmpi sge, %35, %93 : vector<1x256xi32>
      %c17_i32_41 = arith.constant 17 : i32
      %95 = vector.broadcast %c17_i32_41 : i32 to vector<1x256xi32>
      %96 = arith.cmpi slt, %35, %95 : vector<1x256xi32>
      %97 = arith.andi %94, %96 : vector<1x256xi1>
      %c-1_i32 = arith.constant -1 : i32
      %98 = vector.broadcast %c-1_i32 : i32 to vector<1x256xi32>
      %99 = arith.cmpi sge, %36, %98 : vector<1x256xi32>
      %100 = arith.andi %97, %99 : vector<1x256xi1>
      %c15_i32_42 = arith.constant 15 : i32
      %101 = vector.broadcast %c15_i32_42 : i32 to vector<1x256xi32>
      %102 = arith.cmpi slt, %36, %101 : vector<1x256xi32>
      %103 = arith.andi %100, %102 : vector<1x256xi1>
      %cst_43 = arith.constant 0.000000e+00 : f32
      %104 = vector.broadcast %cst_43 : f32 to vector<1x256xf32>
      %105 = arith.select %103, %92, %104 : vector<1x256xi1>, vector<1x256xf32>
      %106 = arith.addf %83, %105 : vector<1x256xf32>
      %c1_i32_44 = arith.constant 1 : i32
      %107 = tpu.dynamic_rotate %32 by %c1_i32_44 dim 1 : vector<1x256xf32>, i32 -> vector<1x256xf32>
      %c1_i32_45 = arith.constant 1 : i32
      %108 = tpu.dynamic_rotate %33 by %c1_i32_45 dim 1 : vector<1x256xf32>, i32 -> vector<1x256xf32>
      %c3 = arith.constant 3 : index
      %109 = memref.load %arg2[%c3] : memref<18xf32, #tpu.memory_space<smem>>
      %c12 = arith.constant 12 : index
      %110 = memref.load %arg2[%c12] : memref<18xf32, #tpu.memory_space<smem>>
      %111 = vector.broadcast %109 : f32 to vector<1x256xf32>
      %112 = arith.mulf %111, %107 : vector<1x256xf32>
      %113 = vector.broadcast %110 : f32 to vector<1x256xf32>
      %114 = arith.mulf %113, %108 : vector<1x256xf32>
      %115 = arith.addf %112, %114 : vector<1x256xf32>
      %c0_i32_46 = arith.constant 0 : i32
      %116 = vector.broadcast %c0_i32_46 : i32 to vector<1x256xi32>
      %117 = arith.cmpi sge, %35, %116 : vector<1x256xi32>
      %c16_i32_47 = arith.constant 16 : i32
      %118 = vector.broadcast %c16_i32_47 : i32 to vector<1x256xi32>
      %119 = arith.cmpi slt, %35, %118 : vector<1x256xi32>
      %120 = arith.andi %117, %119 : vector<1x256xi1>
      %c1_i32_48 = arith.constant 1 : i32
      %121 = vector.broadcast %c1_i32_48 : i32 to vector<1x256xi32>
      %122 = arith.cmpi sge, %36, %121 : vector<1x256xi32>
      %123 = arith.andi %120, %122 : vector<1x256xi1>
      %c17_i32_49 = arith.constant 17 : i32
      %124 = vector.broadcast %c17_i32_49 : i32 to vector<1x256xi32>
      %125 = arith.cmpi slt, %36, %124 : vector<1x256xi32>
      %126 = arith.andi %123, %125 : vector<1x256xi1>
      %cst_50 = arith.constant 0.000000e+00 : f32
      %127 = vector.broadcast %cst_50 : f32 to vector<1x256xf32>
      %128 = arith.select %126, %115, %127 : vector<1x256xi1>, vector<1x256xf32>
      %129 = arith.addf %106, %128 : vector<1x256xf32>
      %c4 = arith.constant 4 : index
      %130 = memref.load %arg2[%c4] : memref<18xf32, #tpu.memory_space<smem>>
      %c13 = arith.constant 13 : index
      %131 = memref.load %arg2[%c13] : memref<18xf32, #tpu.memory_space<smem>>
      %132 = vector.broadcast %130 : f32 to vector<1x256xf32>
      %133 = arith.mulf %132, %32 : vector<1x256xf32>
      %134 = vector.broadcast %131 : f32 to vector<1x256xf32>
      %135 = arith.mulf %134, %33 : vector<1x256xf32>
      %136 = arith.addf %133, %135 : vector<1x256xf32>
      %c0_i32_51 = arith.constant 0 : i32
      %137 = vector.broadcast %c0_i32_51 : i32 to vector<1x256xi32>
      %138 = arith.cmpi sge, %35, %137 : vector<1x256xi32>
      %c16_i32_52 = arith.constant 16 : i32
      %139 = vector.broadcast %c16_i32_52 : i32 to vector<1x256xi32>
      %140 = arith.cmpi slt, %35, %139 : vector<1x256xi32>
      %141 = arith.andi %138, %140 : vector<1x256xi1>
      %c0_i32_53 = arith.constant 0 : i32
      %142 = vector.broadcast %c0_i32_53 : i32 to vector<1x256xi32>
      %143 = arith.cmpi sge, %36, %142 : vector<1x256xi32>
      %144 = arith.andi %141, %143 : vector<1x256xi1>
      %c16_i32_54 = arith.constant 16 : i32
      %145 = vector.broadcast %c16_i32_54 : i32 to vector<1x256xi32>
      %146 = arith.cmpi slt, %36, %145 : vector<1x256xi32>
      %147 = arith.andi %144, %146 : vector<1x256xi1>
      %cst_55 = arith.constant 0.000000e+00 : f32
      %148 = vector.broadcast %cst_55 : f32 to vector<1x256xf32>
      %149 = arith.select %147, %136, %148 : vector<1x256xi1>, vector<1x256xf32>
      %150 = arith.addf %129, %149 : vector<1x256xf32>
      %c255_i32 = arith.constant 255 : i32
      %151 = tpu.dynamic_rotate %32 by %c255_i32 dim 1 : vector<1x256xf32>, i32 -> vector<1x256xf32>
      %c255_i32_56 = arith.constant 255 : i32
      %152 = tpu.dynamic_rotate %33 by %c255_i32_56 dim 1 : vector<1x256xf32>, i32 -> vector<1x256xf32>
      %c5 = arith.constant 5 : index
      %153 = memref.load %arg2[%c5] : memref<18xf32, #tpu.memory_space<smem>>
      %c14 = arith.constant 14 : index
      %154 = memref.load %arg2[%c14] : memref<18xf32, #tpu.memory_space<smem>>
      %155 = vector.broadcast %153 : f32 to vector<1x256xf32>
      %156 = arith.mulf %155, %151 : vector<1x256xf32>
      %157 = vector.broadcast %154 : f32 to vector<1x256xf32>
      %158 = arith.mulf %157, %152 : vector<1x256xf32>
      %159 = arith.addf %156, %158 : vector<1x256xf32>
      %c0_i32_57 = arith.constant 0 : i32
      %160 = vector.broadcast %c0_i32_57 : i32 to vector<1x256xi32>
      %161 = arith.cmpi sge, %35, %160 : vector<1x256xi32>
      %c16_i32_58 = arith.constant 16 : i32
      %162 = vector.broadcast %c16_i32_58 : i32 to vector<1x256xi32>
      %163 = arith.cmpi slt, %35, %162 : vector<1x256xi32>
      %164 = arith.andi %161, %163 : vector<1x256xi1>
      %c-1_i32_59 = arith.constant -1 : i32
      %165 = vector.broadcast %c-1_i32_59 : i32 to vector<1x256xi32>
      %166 = arith.cmpi sge, %36, %165 : vector<1x256xi32>
      %167 = arith.andi %164, %166 : vector<1x256xi1>
      %c15_i32_60 = arith.constant 15 : i32
      %168 = vector.broadcast %c15_i32_60 : i32 to vector<1x256xi32>
      %169 = arith.cmpi slt, %36, %168 : vector<1x256xi32>
      %170 = arith.andi %167, %169 : vector<1x256xi1>
      %cst_61 = arith.constant 0.000000e+00 : f32
      %171 = vector.broadcast %cst_61 : f32 to vector<1x256xf32>
      %172 = arith.select %170, %159, %171 : vector<1x256xi1>, vector<1x256xf32>
      %173 = arith.addf %150, %172 : vector<1x256xf32>
      %c241_i32 = arith.constant 241 : i32
      %174 = tpu.dynamic_rotate %32 by %c241_i32 dim 1 : vector<1x256xf32>, i32 -> vector<1x256xf32>
      %c241_i32_62 = arith.constant 241 : i32
      %175 = tpu.dynamic_rotate %33 by %c241_i32_62 dim 1 : vector<1x256xf32>, i32 -> vector<1x256xf32>
      %c6 = arith.constant 6 : index
      %176 = memref.load %arg2[%c6] : memref<18xf32, #tpu.memory_space<smem>>
      %c15 = arith.constant 15 : index
      %177 = memref.load %arg2[%c15] : memref<18xf32, #tpu.memory_space<smem>>
      %178 = vector.broadcast %176 : f32 to vector<1x256xf32>
      %179 = arith.mulf %178, %174 : vector<1x256xf32>
      %180 = vector.broadcast %177 : f32 to vector<1x256xf32>
      %181 = arith.mulf %180, %175 : vector<1x256xf32>
      %182 = arith.addf %179, %181 : vector<1x256xf32>
      %c-1_i32_63 = arith.constant -1 : i32
      %183 = vector.broadcast %c-1_i32_63 : i32 to vector<1x256xi32>
      %184 = arith.cmpi sge, %35, %183 : vector<1x256xi32>
      %c15_i32_64 = arith.constant 15 : i32
      %185 = vector.broadcast %c15_i32_64 : i32 to vector<1x256xi32>
      %186 = arith.cmpi slt, %35, %185 : vector<1x256xi32>
      %187 = arith.andi %184, %186 : vector<1x256xi1>
      %c1_i32_65 = arith.constant 1 : i32
      %188 = vector.broadcast %c1_i32_65 : i32 to vector<1x256xi32>
      %189 = arith.cmpi sge, %36, %188 : vector<1x256xi32>
      %190 = arith.andi %187, %189 : vector<1x256xi1>
      %c17_i32_66 = arith.constant 17 : i32
      %191 = vector.broadcast %c17_i32_66 : i32 to vector<1x256xi32>
      %192 = arith.cmpi slt, %36, %191 : vector<1x256xi32>
      %193 = arith.andi %190, %192 : vector<1x256xi1>
      %cst_67 = arith.constant 0.000000e+00 : f32
      %194 = vector.broadcast %cst_67 : f32 to vector<1x256xf32>
      %195 = arith.select %193, %182, %194 : vector<1x256xi1>, vector<1x256xf32>
      %196 = arith.addf %173, %195 : vector<1x256xf32>
      %c240_i32 = arith.constant 240 : i32
      %197 = tpu.dynamic_rotate %32 by %c240_i32 dim 1 : vector<1x256xf32>, i32 -> vector<1x256xf32>
      %c240_i32_68 = arith.constant 240 : i32
      %198 = tpu.dynamic_rotate %33 by %c240_i32_68 dim 1 : vector<1x256xf32>, i32 -> vector<1x256xf32>
      %c7 = arith.constant 7 : index
      %199 = memref.load %arg2[%c7] : memref<18xf32, #tpu.memory_space<smem>>
      %c16 = arith.constant 16 : index
      %200 = memref.load %arg2[%c16] : memref<18xf32, #tpu.memory_space<smem>>
      %201 = vector.broadcast %199 : f32 to vector<1x256xf32>
      %202 = arith.mulf %201, %197 : vector<1x256xf32>
      %203 = vector.broadcast %200 : f32 to vector<1x256xf32>
      %204 = arith.mulf %203, %198 : vector<1x256xf32>
      %205 = arith.addf %202, %204 : vector<1x256xf32>
      %c-1_i32_69 = arith.constant -1 : i32
      %206 = vector.broadcast %c-1_i32_69 : i32 to vector<1x256xi32>
      %207 = arith.cmpi sge, %35, %206 : vector<1x256xi32>
      %c15_i32_70 = arith.constant 15 : i32
      %208 = vector.broadcast %c15_i32_70 : i32 to vector<1x256xi32>
      %209 = arith.cmpi slt, %35, %208 : vector<1x256xi32>
      %210 = arith.andi %207, %209 : vector<1x256xi1>
      %c0_i32_71 = arith.constant 0 : i32
      %211 = vector.broadcast %c0_i32_71 : i32 to vector<1x256xi32>
      %212 = arith.cmpi sge, %36, %211 : vector<1x256xi32>
      %213 = arith.andi %210, %212 : vector<1x256xi1>
      %c16_i32_72 = arith.constant 16 : i32
      %214 = vector.broadcast %c16_i32_72 : i32 to vector<1x256xi32>
      %215 = arith.cmpi slt, %36, %214 : vector<1x256xi32>
      %216 = arith.andi %213, %215 : vector<1x256xi1>
      %cst_73 = arith.constant 0.000000e+00 : f32
      %217 = vector.broadcast %cst_73 : f32 to vector<1x256xf32>
      %218 = arith.select %216, %205, %217 : vector<1x256xi1>, vector<1x256xf32>
      %219 = arith.addf %196, %218 : vector<1x256xf32>
      %c239_i32 = arith.constant 239 : i32
      %220 = tpu.dynamic_rotate %32 by %c239_i32 dim 1 : vector<1x256xf32>, i32 -> vector<1x256xf32>
      %c239_i32_74 = arith.constant 239 : i32
      %221 = tpu.dynamic_rotate %33 by %c239_i32_74 dim 1 : vector<1x256xf32>, i32 -> vector<1x256xf32>
      %c8 = arith.constant 8 : index
      %222 = memref.load %arg2[%c8] : memref<18xf32, #tpu.memory_space<smem>>
      %c17 = arith.constant 17 : index
      %223 = memref.load %arg2[%c17] : memref<18xf32, #tpu.memory_space<smem>>
      %224 = vector.broadcast %222 : f32 to vector<1x256xf32>
      %225 = arith.mulf %224, %220 : vector<1x256xf32>
      %226 = vector.broadcast %223 : f32 to vector<1x256xf32>
      %227 = arith.mulf %226, %221 : vector<1x256xf32>
      %228 = arith.addf %225, %227 : vector<1x256xf32>
      %c-1_i32_75 = arith.constant -1 : i32
      %229 = vector.broadcast %c-1_i32_75 : i32 to vector<1x256xi32>
      %230 = arith.cmpi sge, %35, %229 : vector<1x256xi32>
      %c15_i32_76 = arith.constant 15 : i32
      %231 = vector.broadcast %c15_i32_76 : i32 to vector<1x256xi32>
      %232 = arith.cmpi slt, %35, %231 : vector<1x256xi32>
      %233 = arith.andi %230, %232 : vector<1x256xi1>
      %c-1_i32_77 = arith.constant -1 : i32
      %234 = vector.broadcast %c-1_i32_77 : i32 to vector<1x256xi32>
      %235 = arith.cmpi sge, %36, %234 : vector<1x256xi32>
      %236 = arith.andi %233, %235 : vector<1x256xi1>
      %c15_i32_78 = arith.constant 15 : i32
      %237 = vector.broadcast %c15_i32_78 : i32 to vector<1x256xi32>
      %238 = arith.cmpi slt, %36, %237 : vector<1x256xi32>
      %239 = arith.andi %236, %238 : vector<1x256xi1>
      %cst_79 = arith.constant 0.000000e+00 : f32
      %240 = vector.broadcast %cst_79 : f32 to vector<1x256xf32>
      %241 = arith.select %239, %228, %240 : vector<1x256xi1>, vector<1x256xf32>
      %242 = arith.addf %219, %241 : vector<1x256xf32>
      %243 = arith.negf %242 : vector<1x256xf32>
      %244 = math.exp %243 : vector<1x256xf32>
      %cst_80 = arith.constant 1.000000e+00 : f32
      %245 = vector.broadcast %cst_80 : f32 to vector<1x256xf32>
      %246 = arith.addf %245, %244 : vector<1x256xf32>
      %247 = arith.divf %245, %246 : vector<1x256xf32>
      %c0_81 = arith.constant 0 : index
      %c0_82 = arith.constant 0 : index
      %c0_83 = arith.constant 0 : index
      %248 = vector.load %arg5[%c0_81, %c0_82, %c0_83] : memref<1x1x256xf32, #tpu.memory_space<vmem>>, vector<1x1x256xf32>
      %249 = vector.shape_cast %248 : vector<1x1x256xf32> to vector<1x256xf32>
      %250 = vector.shape_cast %247 : vector<1x256xf32> to vector<1x1x256xf32>
      tpu.vector_store %arg5[%c0_81, %c0_82, %c0_83], %250 {strides = array<i32>} : memref<1x1x256xf32, #tpu.memory_space<vmem>>, vector<1x1x256xf32>,
    } else {
    }
    return
  }
  func.func @transform_0(%arg0: i32, %arg1: i32) -> i32 {
    %c0_i32 = arith.constant 0 : i32
    %c0_i32_0 = arith.constant 0 : i32
    return %c0_i32 : i32
  }
  func.func @transform_1(%arg0: i32, %arg1: i32) -> (i32, i32) {
    %c0_i32 = arith.constant 0 : i32
    %c0_i32_0 = arith.constant 0 : i32
    %c0_i32_1 = arith.constant 0 : i32
    return %c0_i32, %c0_i32_0 : i32, i32
  }
  func.func @transform_2(%arg0: i32, %arg1: i32) -> (i32, i32, i32) {
    %c0_i32 = arith.constant 0 : i32
    %c0_i32_0 = arith.constant 0 : i32
    return %arg0, %arg1, %c0_i32 : i32, i32, i32
  }
  func.func @transform_3(%arg0: i32, %arg1: i32) -> (i32, i32, i32) {
    %c0_i32 = arith.constant 0 : i32
    %c0_i32_0 = arith.constant 0 : i32
    %c0_i32_1 = arith.constant 0 : i32
    return %arg0, %c0_i32, %c0_i32_0 : i32, i32, i32
  }
}

</mosaic_0001>

<llo_original>
// kernel: tpu_custom_call.1
$region0: #{tpu_custom_call.1}
  #allocation0 [shape = 'u32[]', space=smem, size = 0x4, offset = 0x4, fixed_abs, tag = 'smem constant byte address 0x4 - core index']
  #allocation1 [shape = 'u32[72,128]{1,0:T(1,128)}', space=vmem, size = 0x9000, scoped, tag = 'internal scratch']
  #allocation2 [shape = 'f32[1,256]{1,0:T(1,128)}', space=vmem, size = 0x400, scoped, tag = 'scratch operand']
  #allocation3 [shape = 'f32[1,256]{1,0:T(1,128)}', space=vmem, size = 0x400, scoped, tag = 'scratch operand']
  %s0 = inlined_call_operand.hbm [shape: f32[18], index: 0, kind: input, shape index: {}]
  %s1 = inlined_call_operand.hbm [shape: s32[2,256], index: 1, kind: input, shape index: {}]
  %s2 = inlined_call_operand.hbm [shape: f32[2,4,256], index: 2, kind: input, shape index: {}]
  %s3 = inlined_call_operand.hbm [shape: f32[2,1,256], index: 3, kind: output, shape index: {}]
  %s4 = sld [smem:[#allocation0]]
  $region65: #{tpu_custom_call.1} parent=0
    _
  %s6 = ssub.s32 1, %s4
  %s7 = scalar_select 0, %s6, %s4
  $region1: #{tpu_custom_call.1} parent=0
    #allocation4 [shape = 'u8[512]{0}', space=smem, size = 0x200, scoped, tag = 'input window, operand 0, single buffered']
    #allocation5 [shape = 's32[2]{0}', space=sflag, size = 0x8, scoped, tag = 'scoped memory for tpu_custom_call.1']
    #allocation6 [shape = 's32[2]{0}', space=sflag, size = 0x8, scoped, tag = 'scoped memory for tpu_custom_call.1']
    #allocation7 [shape = 's32[2]{0}', space=sflag, size = 0x8, scoped, tag = 'scoped memory for tpu_custom_call.1']
    #allocation8 [shape = 'u8[2048]{0}', space=vmem, size = 0x800, scoped, tag = 'input window, operand 1, single buffered']
    #allocation9 [shape = 'u8[8192]{0}', space=vmem, size = 0x2000, scoped, tag = 'input window, operand 2']
    #allocation10 [shape = 's32[2]{0}', space=sflag, size = 0x8, scoped, tag = 'scoped memory for tpu_custom_call.1']
    #allocation11 [shape = 'u8[2048]{0}', space=vmem, size = 0x800, scoped, tag = 'output window, operand 0']
    %8 = vsyncpa [#allocation7], 0
    %9 = vsyncpa [#allocation5], 0
    %10 = vsyncpa [#allocation10], 0
    %s11 = scalar_lea.sflag [#allocation10], 1
    %12 = vsyncpa %s11, 0
    %13 = vsyncpa [#allocation6], 0
    %s14 = scalar_lea.sflag [#allocation6], 1
    %15 = vsyncpa %s14, 0
    loop: start=0, step=1, limit=4
    $region2: #{tpu_custom_call.1} parent=1 // loop_pre_header
      _
    $region3: #{tpu_custom_call.1} parent=1 // loop_header
      %s17 = sphi 0, %s21
      %p18 = scmp.ge.s32.totalorder %s17, 4
      %s24 = sphi 0, %s36
      %s25 = sphi 0, %s32
      %s26 = sphi 0, %s24
      %s27 = sphi 0, %s25
      %s28 = sphi 0, %s26
      %s29 = sphi 0, %s27
      %s37 = sphi 0, %s37
      %s39 = sphi 0, %s37
      %s40 = sphi 0, %s39
      %s54 = sphi 0, %s40
      %s58 = sphi 0, %s58
      %s60 = sphi 0, %s58
      %s61 = sphi 0, %s60
      %s75 = sphi 0, %s61
      %s83 = sphi 0, %s85
      %s86 = sphi 0, %s83
      %s87 = sphi 0, %s86
      %s103 = sphi 0, %s87
      %s109 = sphi 0, %s111
      %s112 = sphi 0, %s109
      %s113 = sphi 0, %s112
      %s129 = sphi 0, %s113
    $region4: #{tpu_custom_call.1} parent=1 // loop_header_branch
      %20 = sbr.rel (%p18) target = $region8
    $region5: #{tpu_custom_call.1} parent=1 // loop_body
      %s22 = ssub.s32 %s17, 1
      %s23 = ssub.s32 %s17, 2
      %s30 = sadd.s32 1, %s25
      %p31 = scmp.ge.s32.totalorder %s30, 1
      %s32 = scalar_select %p31, 0, %s30
      %s33 = sadd.s32 1, %s24
      %s34 = scalar_select %p31, %s33, %s24
      %p35 = scmp.ge.s32.totalorder %s34, 2
      %s36 = scalar_select %p35, 0, %s34
      %s38 = sadd.s32 %s37, 1
      %p41 = scmp.eq.s32.totalorder %s17, 1
      %p42 = scmp.ne.s32.totalorder %s37, %s39
      %p43 = scmp.eq.s32.totalorder %s17, 0
      %p44 = por %p42, %p43
      %p45 = scmp.ne.s32.totalorder %s37, %s39
      %p46 = scmp.eq.s32.totalorder %s22, 1
      %p47 = por %p45, %p46
      %p48 = scmp.ne.s32.totalorder %s39, %s40
      %p49 = scmp.eq.s32.totalorder %s22, 0
      %p50 = por %p48, %p49
      %p51 = scmp.ne.s32.totalorder %s39, %s40
      %p52 = scmp.eq.s32.totalorder %s23, 1
      %p53 = por %p51, %p52
      %p55 = scmp.ne.s32.totalorder %s40, %s54
      %p56 = scmp.eq.s32.totalorder %s23, 0
      %p57 = por %p55, %p56
      %s59 = sadd.s32 %s58, 1
      %p62 = scmp.eq.s32.totalorder %s17, 1
      %p63 = scmp.ne.s32.totalorder %s58, %s60
      %p64 = scmp.eq.s32.totalorder %s17, 0
      %p65 = por %p63, %p64
      %p66 = scmp.ne.s32.totalorder %s58, %s60
      %p67 = scmp.eq.s32.totalorder %s22, 1
      %p68 = por %p66, %p67
      %p69 = scmp.ne.s32.totalorder %s60, %s61
      %p70 = scmp.eq.s32.totalorder %s22, 0
      %p71 = por %p69, %p70
      %p72 = scmp.ne.s32.totalorder %s60, %s61
      %p73 = scmp.eq.s32.totalorder %s23, 1
      %p74 = por %p72, %p73
      %p76 = scmp.ne.s32.totalorder %s61, %s75
      %p77 = scmp.eq.s32.totalorder %s23, 0
      %p78 = por %p76, %p77
      %s79 = ssub.s32 %s24, %s36
      %s80 = ssub.s32 %s25, %s32
      %s81 = sor.u32 %s79, %s80
      %p82 = scmp.eq.s32.totalorder %s81, 0
      %s84 = sadd.s32 %s83, 1
      %s85 = scalar_select %p82, %s83, %s84
      %p88 = pneg %p82
      %p89 = scmp.eq.s32.totalorder %s17, 1
      %p90 = por %p88, %p89
      %p91 = scmp.ne.s32.totalorder %s83, %s86
      %p92 = scmp.eq.s32.totalorder %s17, 0
      %p93 = por %p91, %p92
      %p94 = scmp.ne.s32.totalorder %s83, %s86
      %p95 = scmp.eq.s32.totalorder %s22, 1
      %p96 = por %p94, %p95
      %p97 = scmp.ne.s32.totalorder %s86, %s87
      %p98 = scmp.eq.s32.totalorder %s22, 0
      %p99 = por %p97, %p98
      %p100 = scmp.ne.s32.totalorder %s86, %s87
      %p101 = scmp.eq.s32.totalorder %s23, 1
      %p102 = por %p100, %p101
      %p104 = scmp.ne.s32.totalorder %s87, %s103
      %p105 = scmp.eq.s32.totalorder %s23, 0
      %p106 = por %p104, %p105
      %s107 = ssub.s32 %s24, %s36
      %p108 = scmp.eq.s32.totalorder %s107, 0
      %s110 = sadd.s32 %s109, 1
      %s111 = scalar_select %p108, %s109, %s110
      %p114 = pneg %p108
      %p115 = scmp.eq.s32.totalorder %s17, 1
      %p116 = por %p114, %p115
      %p117 = scmp.ne.s32.totalorder %s109, %s112
      %p118 = scmp.eq.s32.totalorder %s17, 0
      %p119 = por %p117, %p118
      %p120 = scmp.ne.s32.totalorder %s109, %s112
      %p121 = scmp.eq.s32.totalorder %s22, 1
      %p122 = por %p120, %p121
      %p123 = scmp.ne.s32.totalorder %s112, %s113
      %p124 = scmp.eq.s32.totalorder %s22, 0
      %p125 = por %p123, %p124
      %p126 = scmp.ne.s32.totalorder %s112, %s113
      %p127 = scmp.eq.s32.totalorder %s23, 1
      %p128 = por %p126, %p127
      %p130 = scmp.ne.s32.totalorder %s113, %s129
      %p131 = scmp.eq.s32.totalorder %s23, 0
      %p132 = por %p130, %p131
      %p133 = scmp.le.s32.totalorder 1, %s17
      %p134 = scmp.lt.s32.totalorder %s17, 3
      %p135 = pnand %p133, %p134
      %p136 = pneg %p135
      // Predicated region
      $region9: #{tpu_custom_call.1} parent=5 // pred_check
        _
      $region10: #{tpu_custom_call.1} parent=5 // pred_check_branch
        %138 = sbr.rel (%p135) target = $region12
      $region11: #{tpu_custom_call.1} parent=5 // pred_region
        %s139 = ssub.s32 %s17, 1
        // Predicated region
        $region13: #{tpu_custom_call.1} parent=11 // pred_check
          %p140 = pneg %p50
        $region14: #{tpu_custom_call.1} parent=11 // pred_check_branch
          %142 = sbr.rel (%p140) target = $region16
        $region15: #{tpu_custom_call.1} parent=11 // pred_region
          %144 = vsyncadd [#allocation7], 0
          %s146 = sshll.u32 %s0, 4
          %s147 = int_to_ptr.hbm [resolvable:$true] %s146
          %149 = dma.hbm_to_smem %s147, 16, [#allocation4], [#allocation7]
        $region16: #{tpu_custom_call.1} parent=11 // pred_fallthru
          _
        // Predicated region
        $region17: #{tpu_custom_call.1} parent=11 // pred_check
          %p150 = pneg %p71
        $region18: #{tpu_custom_call.1} parent=11 // pred_check_branch
          %152 = sbr.rel (%p150) target = $region20
        $region19: #{tpu_custom_call.1} parent=11 // pred_region
          %154 = vsyncadd [#allocation5], 0
          %s156 = sshll.u32 %s1, 4
          %s157 = int_to_ptr.hbm [resolvable:$true] %s156
          %s158 = sshll.u32 [#allocation8], 4
          %s159 = int_to_ptr.vmem [resolvable:$true] %s158
          %161 = dma.hbm_to_vmem [thread:$0]  %s157, 64, %s159, [#allocation5]
        $region20: #{tpu_custom_call.1} parent=11 // pred_fallthru
          _
      $region12: #{tpu_custom_call.1} parent=5 // pred_fallthru
        _
      %p162 = scmp.lt.s32.totalorder %s17, 2
      // Predicated region
      $region21: #{tpu_custom_call.1} parent=5 // pred_check
        %p163 = pneg %p162
      $region22: #{tpu_custom_call.1} parent=5 // pred_check_branch
        %165 = sbr.rel (%p163) target = $region24
      $region23: #{tpu_custom_call.1} parent=5 // pred_region
        // Predicated region
        $region25: #{tpu_custom_call.1} parent=23 // pred_check
          %p166 = pneg %p93
        $region26: #{tpu_custom_call.1} parent=23 // pred_check_branch
          %168 = sbr.rel (%p166) target = $region28
        $region27: #{tpu_custom_call.1} parent=23 // pred_region
          %s169 = sand.u32 %s83, 1
          %s170 = scalar_lea.sflag [#allocation10], %s169
          %s171 = sand.u32 %s83, 1
          %s172 = smul.addr %s171, 8
          %s173 = scalar_lea.vmem [#allocation9], %s172
          %175 = vsyncadd %s170, 0
          %s176 = smul.addr %s25, 2
          %s177 = smul.addr %s24, 2
          %s178 = sadd.s32 %s176, %s177
          %s179 = smul.addr %s178, 4
          %s180 = scalar_lea.hbm %s2, %s179
          %s182 = sshll.u32 %s180, 4
          %s183 = int_to_ptr.hbm [resolvable:$true] %s182
          %s184 = sshll.u32 %s173, 4
          %s185 = int_to_ptr.vmem [resolvable:$true] %s184
          %187 = dma.hbm_to_vmem [thread:$0]  %s183, 128, %s185, %s170
        $region28: #{tpu_custom_call.1} parent=23 // pred_fallthru
          _
      $region24: #{tpu_custom_call.1} parent=5 // pred_fallthru
        _
      %p188 = scmp.le.s32.totalorder 1, %s17
      %p189 = scmp.lt.s32.totalorder %s17, 3
      %p190 = pnand %p188, %p189
      %p191 = pneg %p190
      // Predicated region
      $region29: #{tpu_custom_call.1} parent=5 // pred_check
        _
      $region30: #{tpu_custom_call.1} parent=5 // pred_check_branch
        %193 = sbr.rel (%p190) target = $region32
      $region31: #{tpu_custom_call.1} parent=5 // pred_region
        %s194 = ssub.s32 %s17, 1
        // Predicated region
        $region33: #{tpu_custom_call.1} parent=31 // pred_check
          %p195 = pneg %p50
        $region34: #{tpu_custom_call.1} parent=31 // pred_check_branch
          %197 = sbr.rel (%p195) target = $region36
        $region35: #{tpu_custom_call.1} parent=31 // pred_region
          %199 = dma.done [#allocation7], 16
        $region36: #{tpu_custom_call.1} parent=31 // pred_fallthru
          _
        // Predicated region
        $region37: #{tpu_custom_call.1} parent=31 // pred_check
          %p200 = pneg %p71
        $region38: #{tpu_custom_call.1} parent=31 // pred_check_branch
          %202 = sbr.rel (%p200) target = $region40
        $region39: #{tpu_custom_call.1} parent=31 // pred_region
          %204 = dma.done [#allocation5], 64
        $region40: #{tpu_custom_call.1} parent=31 // pred_fallthru
          _
        %s205 = sand.u32 %s86, 1
        %s206 = scalar_lea.sflag [#allocation10], %s205
        %s207 = sand.u32 %s86, 1
        %s208 = smul.addr %s207, 8
        %s209 = scalar_lea.vmem [#allocation9], %s208
        // Predicated region
        $region41: #{tpu_custom_call.1} parent=31 // pred_check
          %p210 = pneg %p99
        $region42: #{tpu_custom_call.1} parent=31 // pred_check_branch
          %212 = sbr.rel (%p210) target = $region44
        $region43: #{tpu_custom_call.1} parent=31 // pred_region
          %214 = dma.done %s206, 128
        $region44: #{tpu_custom_call.1} parent=31 // pred_fallthru
          _
        %215 = sfence
        %p216 = pneg %p50
        %p217 = pneg %p47
        %p218 = pneg %p71
        %p219 = pneg %p68
        %s220 = sand.u32 %s86, 1
        %s221 = scalar_lea.sflag [#allocation10], %s220
        %s222 = sand.u32 %s86, 1
        %s223 = smul.addr %s222, 8
        %s224 = scalar_lea.vmem [#allocation9], %s223
        %p225 = pneg %p99
        %p226 = pneg %p96
        %p227 = pneg %p125
        %p228 = pneg %p122
        %s229 = sand.u32 %s112, 1
        %s230 = scalar_lea.sflag [#allocation6], %s229
        %s231 = sand.u32 %s112, 1
        %s232 = smul.addr %s231, 2
        %s233 = scalar_lea.vmem [#allocation11], %s232
        %p234 = scmp.eq.s32.totalorder %s27, 0
        // Predicated region
        $region45: #{tpu_custom_call.1} parent=31 // pred_check
          %p235 = pneg %p234
        $region46: #{tpu_custom_call.1} parent=31 // pred_check_branch
          %237 = sbr.rel (%p235) target = $region48
        $region47: #{tpu_custom_call.1} parent=31 // pred_region
          %v238 = vlaneseq
          %vm239 = vcmp.ge.s32.totalorder %v238, 0
          %vm240 = vcmp.lt.s32.totalorder %v238, 256
          %vm241 = vmand %vm239, %vm240
          %242 = vst.msk [vmem:[#allocation2] sm:$0x3] %vm241, 0.0
          %243 = vst.msk [vmem:[#allocation3] sm:$0x3] %vm241, -inf
        $region48: #{tpu_custom_call.1} parent=31 // pred_fallthru
          _
        %v244 = vld [vmem:[#allocation2] sm:$0x3]
        %v245 = vld [vmem:[#allocation3] sm:$0x3]
        %v246 = vld [vmem:[%s209] ss:$4 sm:$0x3]
        %v247 = vadd.f32 %v244, %v246
        %v248 = vmax.f32 %v245, %v246
        %s249 = scalar_lea.vmem %s209, 1 [#allocation9]
        %v250 = vld [vmem:[%s249] ss:$4 sm:$0x3]
        %v251 = vadd.f32 %v247, %v250
        %v252 = vmax.f32 %v248, %v250
        %s253 = scalar_lea.vmem %s209, 2 [#allocation9]
        %v254 = vld [vmem:[%s253] ss:$4 sm:$0x3]
        %v255 = vadd.f32 %v251, %v254
        %v256 = vmax.f32 %v252, %v254
        %s257 = scalar_lea.vmem %s209, 3 [#allocation9]
        %v258 = vld [vmem:[%s257] ss:$4 sm:$0x3]
        %v259 = vadd.f32 %v255, %v258
        %v260 = vmax.f32 %v256, %v258
        %v261 = vlaneseq
        %vm262 = vcmp.ge.s32.totalorder %v261, 0
        %vm263 = vcmp.lt.s32.totalorder %v261, 256
        %vm264 = vmand %vm262, %vm263
        %265 = vst.msk [vmem:[#allocation2] sm:$0x3] %vm264, %v259
        %266 = vst.msk [vmem:[#allocation3] sm:$0x3] %vm264, %v260
        // Predicated region
        $region49: #{tpu_custom_call.1} parent=31 // pred_check
          %p267 = pneg %p234
        $region50: #{tpu_custom_call.1} parent=31 // pred_check_branch
          %269 = sbr.rel (%p267) target = $region52
        $region51: #{tpu_custom_call.1} parent=31 // pred_region
          %v270 = vld [vmem:[#allocation2] sm:$0x3]
          %v271 = vmul.f32 %v270, 0.25
          %v272 = vld [vmem:[#allocation3] sm:$0x3]
          %v273 = vld [vmem:[#allocation8] sm:$0xf]
          %v275 = vperm.slane %v271, 0
          %v276 = vperm.slane %v271, 1
          %279 = vrot.lane.b32.xlu0 %v275, 17
          %v280 = vpop.permute.xlu0 %279
          %281 = vrot.lane.b32.xlu0 %v276, 17
          %v282 = vpop.permute.xlu0 %281
          %v283 = vlaneseq
          %v284 = vand.u32 %v283, 127
          %vm285 = vcmp.lt.s32.totalorder %v284, 17
          %v286 = vsel %vm285, %v280, %v282
          %v287 = vsel %vm285, %v282, %v280
          %v289 = vperm.slane %v272, 0
          %v290 = vperm.slane %v272, 1
          %293 = vrot.lane.b32.xlu0 %v289, 17
          %v294 = vpop.permute.xlu0 %293
          %295 = vrot.lane.b32.xlu0 %v290, 17
          %v296 = vpop.permute.xlu0 %295
          %v297 = vsel %vm285, %v294, %v296
          %v298 = vsel %vm285, %v296, %v294
          %s299 = sld [smem:[#allocation4]]
          %s300 = sld [smem:[#allocation4 + $0x9]]
          %v301 = vstv %s299
          %v302 = vmul.f32 %v301, %v287
          %v303 = vmul.f32 %v301, %v286
          %v304 = vstv %s300
          %v305 = vmul.f32 %v304, %v298
          %v306 = vmul.f32 %v304, %v297
          %v307 = vadd.f32 %v302, %v305
          %v308 = vadd.f32 %v303, %v306
          %vm309 = vcmp.ge.s32.totalorder %v273, 1
          %vm310 = vcmp.lt.s32.totalorder %v273, 17
          %vm311 = vmand %vm309, %vm310
          %v312 = vsel %vm309, 1, 0
          %v313 = vrot.slane %v312, 7
          %v314 = vrot.slane %v313, 2
          %vm315 = vcmp.ne.s32.totalorder %v314, 0
          %vm316 = vmand %vm311, %vm315
          %v317 = vsel %vm310, 1, 0
          %v318 = vrot.slane %v317, 7
          %v319 = vrot.slane %v318, 2
          %vm320 = vcmp.ne.s32.totalorder %v319, 0
          %vm321 = vmand %vm316, %vm320
          %v324 = vrot.slane %v308, 6
          %vm325 = vcmask 1041408
          %v326 = vsel %vm325, %v307, %v324
          %v328 = vsel %vm321, %v326, 0.0
          %v329 = vadd.f32 %v328, 0.0
          %330 = vrot.lane.b32.xlu0 %v275, 16
          %v331 = vpop.permute.xlu0 %330
          %332 = vrot.lane.b32.xlu0 %v276, 16
          %v333 = vpop.permute.xlu0 %332
          %vm334 = vcmp.lt.s32.totalorder %v284, 16
          %v335 = vsel %vm334, %v331, %v333
          %v336 = vsel %vm334, %v333, %v331
          %337 = vrot.lane.b32.xlu0 %v289, 16
          %v338 = vpop.permute.xlu0 %337
          %339 = vrot.lane.b32.xlu0 %v290, 16
          %v340 = vpop.permute.xlu0 %339
          %v341 = vsel %vm334, %v338, %v340
          %v342 = vsel %vm334, %v340, %v338
          %s343 = sld [smem:[#allocation4 + $0x1]]
          %s344 = sld [smem:[#allocation4 + $0xa]]
          %v345 = vstv %s343
          %v346 = vmul.f32 %v345, %v336
          %v347 = vmul.f32 %v345, %v335
          %v348 = vstv %s344
          %v349 = vmul.f32 %v348, %v342
          %v350 = vmul.f32 %v348, %v341
          %v351 = vadd.f32 %v346, %v349
          %v352 = vadd.f32 %v347, %v350
          %vm353 = vcmp.ge.s32.totalorder %v273, 0
          %v354 = vsel %vm353, 1, 0
          %v355 = vrot.slane %v354, 7
          %v356 = vrot.slane %v355, 2
          %vm357 = vcmp.ne.s32.totalorder %v356, 0
          %vm358 = vmand %vm311, %vm357
          %vm359 = vcmp.lt.s32.totalorder %v273, 16
          %v360 = vsel %vm359, 1, 0
          %v361 = vrot.slane %v360, 7
          %v362 = vrot.slane %v361, 2
          %vm363 = vcmp.ne.s32.totalorder %v362, 0
          %vm364 = vmand %vm358, %vm363
          %v367 = vrot.slane %v352, 6
          %v368 = vsel %vm325, %v351, %v367
          %v370 = vsel %vm364, %v368, 0.0
          %v371 = vadd.f32 %v329, %v370
          %372 = vrot.lane.b32.xlu0 %v275, 15
          %v373 = vpop.permute.xlu0 %372
          %374 = vrot.lane.b32.xlu0 %v276, 15
          %v375 = vpop.permute.xlu0 %374
          %vm376 = vcmp.lt.s32.totalorder %v284, 15
          %v377 = vsel %vm376, %v373, %v375
          %v378 = vsel %vm376, %v375, %v373
          %379 = vrot.lane.b32.xlu0 %v289, 15
          %v380 = vpop.permute.xlu0 %379
          %381 = vrot.lane.b32.xlu0 %v290, 15
          %v382 = vpop.permute.xlu0 %381
          %v383 = vsel %vm376, %v380, %v382
          %v384 = vsel %vm376, %v382, %v380
          %s385 = sld [smem:[#allocation4 + $0x2]]
          %s386 = sld [smem:[#allocation4 + $0xb]]
          %v387 = vstv %s385
          %v388 = vmul.f32 %v387, %v378
          %v389 = vmul.f32 %v387, %v377
          %v390 = vstv %s386
          %v391 = vmul.f32 %v390, %v384
          %v392 = vmul.f32 %v390, %v383
          %v393 = vadd.f32 %v388, %v391
          %v394 = vadd.f32 %v389, %v392
          %vm395 = vcmp.ge.s32.totalorder %v273, 4294967295
          %v396 = vsel %vm395, 1, 0
          %v397 = vrot.slane %v396, 7
          %v398 = vrot.slane %v397, 2
          %vm399 = vcmp.ne.s32.totalorder %v398, 0
          %vm400 = vmand %vm311, %vm399
          %vm401 = vcmp.lt.s32.totalorder %v273, 15
          %v402 = vsel %vm401, 1, 0
          %v403 = vrot.slane %v402, 7
          %v404 = vrot.slane %v403, 2
          %vm405 = vcmp.ne.s32.totalorder %v404, 0
          %vm406 = vmand %vm400, %vm405
          %v409 = vrot.slane %v394, 6
          %v410 = vsel %vm325, %v393, %v409
          %v412 = vsel %vm406, %v410, 0.0
          %v413 = vadd.f32 %v371, %v412
          %414 = vrot.lane.b32.xlu0 %v275, 1
          %v415 = vpop.permute.xlu0 %414
          %416 = vrot.lane.b32.xlu0 %v276, 1
          %v417 = vpop.permute.xlu0 %416
          %vm418 = vcmp.lt.s32.totalorder %v284, 1
          %v419 = vsel %vm418, %v415, %v417
          %v420 = vsel %vm418, %v417, %v415
          %421 = vrot.lane.b32.xlu0 %v289, 1
          %v422 = vpop.permute.xlu0 %421
          %423 = vrot.lane.b32.xlu0 %v290, 1
          %v424 = vpop.permute.xlu0 %423
          %v425 = vsel %vm418, %v422, %v424
          %v426 = vsel %vm418, %v424, %v422
          %s427 = sld [smem:[#allocation4 + $0x3]]
          %s428 = sld [smem:[#allocation4 + $0xc]]
          %v429 = vstv %s427
          %v430 = vmul.f32 %v429, %v420
          %v431 = vmul.f32 %v429, %v419
          %v432 = vstv %s428
          %v433 = vmul.f32 %v432, %v426
          %v434 = vmul.f32 %v432, %v425
          %v435 = vadd.f32 %v430, %v433
          %v436 = vadd.f32 %v431, %v434
          %vm437 = vmand %vm353, %vm359
          %vm438 = vmand %vm437, %vm315
          %vm439 = vmand %vm438, %vm320
          %v442 = vrot.slane %v436, 6
          %v443 = vsel %vm325, %v435, %v442
          %v445 = vsel %vm439, %v443, 0.0
          %v446 = vadd.f32 %v413, %v445
          %s447 = sld [smem:[#allocation4 + $0x4]]
          %s448 = sld [smem:[#allocation4 + $0xd]]
          %v449 = vstv %s447
          %v450 = vmul.f32 %v449, %v271
          %v451 = vstv %s448
          %v452 = vmul.f32 %v451, %v272
          %v453 = vadd.f32 %v450, %v452
          %vm454 = vmand %vm437, %vm357
          %vm455 = vmand %vm454, %vm363
          %v458 = vunpack.c.l.s4 857870592
          %v459 = vunpack.c.0.s8 %v458
          %v460 = vperm.slane %v453, %v459
          %v462 = vsel %vm455, %v460, 0.0
          %v463 = vadd.f32 %v446, %v462
          %464 = vrot.lane.b32.xlu0 %v275, 127
          %v465 = vpop.permute.xlu0 %464
          %466 = vrot.lane.b32.xlu0 %v276, 127
          %v467 = vpop.permute.xlu0 %466
          %vm468 = vcmp.lt.s32.totalorder %v284, 127
          %v469 = vsel %vm468, %v465, %v467
          %v470 = vsel %vm468, %v467, %v465
          %471 = vrot.lane.b32.xlu0 %v289, 127
          %v472 = vpop.permute.xlu0 %471
          %473 = vrot.lane.b32.xlu0 %v290, 127
          %v474 = vpop.permute.xlu0 %473
          %v475 = vsel %vm468, %v472, %v474
          %v476 = vsel %vm468, %v474, %v472
          %s477 = sld [smem:[#allocation4 + $0x5]]
          %s478 = sld [smem:[#allocation4 + $0xe]]
          %v479 = vstv %s477
          %v480 = vmul.f32 %v479, %v469
          %v481 = vmul.f32 %v479, %v470
          %v482 = vstv %s478
          %v483 = vmul.f32 %v482, %v475
          %v484 = vmul.f32 %v482, %v476
          %v485 = vadd.f32 %v480, %v483
          %v486 = vadd.f32 %v481, %v484
          %vm487 = vmand %vm437, %vm399
          %vm488 = vmand %vm487, %vm405
          %v491 = vrot.slane %v486, 6
          %v492 = vsel %vm325, %v485, %v491
          %v494 = vsel %vm488, %v492, 0.0
          %v495 = vadd.f32 %v463, %v494
          %496 = vrot.lane.b32.xlu0 %v275, 113
          %v497 = vpop.permute.xlu0 %496
          %498 = vrot.lane.b32.xlu0 %v276, 113
          %v499 = vpop.permute.xlu0 %498
          %vm500 = vcmp.lt.s32.totalorder %v284, 113
          %v501 = vsel %vm500, %v497, %v499
          %v502 = vsel %vm500, %v499, %v497
          %503 = vrot.lane.b32.xlu0 %v289, 113
          %v504 = vpop.permute.xlu0 %503
          %505 = vrot.lane.b32.xlu0 %v290, 113
          %v506 = vpop.permute.xlu0 %505
          %v507 = vsel %vm500, %v504, %v506
          %v508 = vsel %vm500, %v506, %v504
          %s509 = sld [smem:[#allocation4 + $0x6]]
          %s510 = sld [smem:[#allocation4 + $0xf]]
          %v511 = vstv %s509
          %v512 = vmul.f32 %v511, %v501
          %v513 = vmul.f32 %v511, %v502
          %v514 = vstv %s510
          %v515 = vmul.f32 %v514, %v507
          %v516 = vmul.f32 %v514, %v508
          %v517 = vadd.f32 %v512, %v515
          %v518 = vadd.f32 %v513, %v516
          %vm519 = vmand %vm395, %vm401
          %vm520 = vmand %vm519, %vm315
          %vm521 = vmand %vm520, %vm320
          %v524 = vrot.slane %v518, 6
          %v525 = vsel %vm325, %v517, %v524
          %v527 = vsel %vm521, %v525, 0.0
          %v528 = vadd.f32 %v495, %v527
          %529 = vrot.lane.b32.xlu0 %v275, 112
          %v530 = vpop.permute.xlu0 %529
          %531 = vrot.lane.b32.xlu0 %v276, 112
          %v532 = vpop.permute.xlu0 %531
          %vm533 = vcmp.lt.s32.totalorder %v284, 112
          %v534 = vsel %vm533, %v530, %v532
          %v535 = vsel %vm533, %v532, %v530
          %536 = vrot.lane.b32.xlu0 %v289, 112
          %v537 = vpop.permute.xlu0 %536
          %538 = vrot.lane.b32.xlu0 %v290, 112
          %v539 = vpop.permute.xlu0 %538
          %v540 = vsel %vm533, %v537, %v539
          %v541 = vsel %vm533, %v539, %v537
          %s542 = sld [smem:[#allocation4 + $0x7]]
          %s543 = sld [smem:[#allocation4 + $0x10]]
          %v544 = vstv %s542
          %v545 = vmul.f32 %v544, %v534
          %v546 = vmul.f32 %v544, %v535
          %v547 = vstv %s543
          %v548 = vmul.f32 %v547, %v540
          %v549 = vmul.f32 %v547, %v541
          %v550 = vadd.f32 %v545, %v548
          %v551 = vadd.f32 %v546, %v549
          %vm552 = vmand %vm519, %vm357
          %vm553 = vmand %vm552, %vm363
          %v556 = vrot.slane %v551, 6
          %v557 = vsel %vm325, %v550, %v556
          %v559 = vsel %vm553, %v557, 0.0
          %v560 = vadd.f32 %v528, %v559
          %561 = vrot.lane.b32.xlu0 %v275, 111
          %v562 = vpop.permute.xlu0 %561
          %563 = vrot.lane.b32.xlu0 %v276, 111
          %v564 = vpop.permute.xlu0 %563
          %vm565 = vcmp.lt.s32.totalorder %v284, 111
          %v566 = vsel %vm565, %v562, %v564
          %v567 = vsel %vm565, %v564, %v562
          %568 = vrot.lane.b32.xlu0 %v289, 111
          %v569 = vpop.permute.xlu0 %568
          %570 = vrot.lane.b32.xlu0 %v290, 111
          %v571 = vpop.permute.xlu0 %570
          %v572 = vsel %vm565, %v569, %v571
          %v573 = vsel %vm565, %v571, %v569
          %s574 = sld [smem:[#allocation4 + $0x8]]
          %s575 = sld [smem:[#allocation4 + $0x11]]
          %v576 = vstv %s574
          %v577 = vmul.f32 %v576, %v566
          %v578 = vmul.f32 %v576, %v567
          %v579 = vstv %s575
          %v580 = vmul.f32 %v579, %v572
          %v581 = vmul.f32 %v579, %v573
          %v582 = vadd.f32 %v577, %v580
          %v583 = vadd.f32 %v578, %v581
          %vm584 = vmand %vm519, %vm399
          %vm585 = vmand %vm584, %vm405
          %v588 = vrot.slane %v583, 6
          %v589 = vsel %vm325, %v582, %v588
          %v591 = vsel %vm585, %v589, 0.0
          %v592 = vadd.f32 %v560, %v591
          %v593 = vxor.u32 %v592, 2147483648
          %v594 = vmul.f32 %v593, 1.442695
          %v595 = vpow.pop %v594
          %v596 = vadd.f32 %v595, 1.0
          %v597 = vrcp.pop %v596
          %v598 = vmul.f32 %v596, %v597
          %v599 = vsub.f32 1.0, %v598
          %v600 = vmul.f32 %v597, %v599
          %v601 = vadd.f32 %v597, %v600
          %vm602 = vweird.f32 %v596
          %vm603 = vweird.f32 %v597
          %vm604 = vmor %vm602, %vm603
          %v605 = vsel %vm604, %v597, %v601
          %v606 = vand.u32 2147483647, %v596
          %vm607 = vcmp.eq.f32.partialorder %v606, 8.507059e+37
          %v608 = vand.u32 %v596, 2147483648
          %v609 = vor.u32 1.1754944e-38, %v608
          %v610 = vsel %vm607, %v609, %v605
          %v611 = vmul.f32 1.0, %v610
          %v613 = vrot.slane %v611, 1
          %v614 = vrot.slane %v611, 2
          %v615 = vrot.slane %v611, 3
          %vm616 = vcmask 1040384
          %v617 = vsel %vm616, %v611, %v613
          %vm618 = vcmask 1042434
          %v619 = vsel %vm618, %v614, %v615
          %v620 = vsel %vm325, %v617, %v619
          %622 = vst.msk [vmem:[%s233] sm:$0x3] %vm264, %v620
        $region52: #{tpu_custom_call.1} parent=31 // pred_fallthru
          _
        %s623 = sand.u32 %s112, 1
        %s624 = scalar_lea.sflag [#allocation6], %s623
        %s625 = sand.u32 %s112, 1
        %s626 = smul.addr %s625, 2
        %s627 = scalar_lea.vmem [#allocation11], %s626
        // Predicated region
        $region53: #{tpu_custom_call.1} parent=31 // pred_check
          %p628 = pneg %p122
        $region54: #{tpu_custom_call.1} parent=31 // pred_check_branch
          %630 = sbr.rel (%p628) target = $region56
        $region55: #{tpu_custom_call.1} parent=31 // pred_region
          %632 = vsyncadd %s624, 0
          %s633 = smul.addr %s26, 2
          %s634 = scalar_lea.hbm %s3, %s633
          %s636 = sshll.u32 %s627, 4
          %s637 = int_to_ptr.vmem [resolvable:$true] %s636
          %s638 = sshll.u32 %s634, 4
          %s639 = int_to_ptr.hbm [resolvable:$true] %s638
          %641 = dma.vmem_to_hbm [thread:$0]  %s637, 32, %s639, %s624
        $region56: #{tpu_custom_call.1} parent=31 // pred_fallthru
          _
      $region32: #{tpu_custom_call.1} parent=5 // pred_fallthru
        _
      %p642 = scmp.le.s32.totalorder 2, %s17
      // Predicated region
      $region57: #{tpu_custom_call.1} parent=5 // pred_check
        %p643 = pneg %p642
      $region58: #{tpu_custom_call.1} parent=5 // pred_check_branch
        %645 = sbr.rel (%p643) target = $region60
      $region59: #{tpu_custom_call.1} parent=5 // pred_region
        %s646 = ssub.s32 %s17, 2
        // Predicated region
        $region61: #{tpu_custom_call.1} parent=59 // pred_check
          %p647 = pneg %p128
        $region62: #{tpu_custom_call.1} parent=59 // pred_check_branch
          %649 = sbr.rel (%p647) target = $region64
        $region63: #{tpu_custom_call.1} parent=59 // pred_region
          %s650 = sand.u32 %s113, 1
          %s651 = scalar_lea.sflag [#allocation6], %s650
          %s652 = sand.u32 %s113, 1
          %s653 = smul.addr %s652, 2
          %s654 = scalar_lea.vmem [#allocation11], %s653
          %656 = dma.done %s651, 32
        $region64: #{tpu_custom_call.1} parent=59 // pred_fallthru
          _
      $region60: #{tpu_custom_call.1} parent=5 // pred_fallthru
        _
    $region6: #{tpu_custom_call.1} parent=1 // loop_footer
      %s21 = sadd.s32 1, %s17
    $region7: #{tpu_custom_call.1} parent=1 // loop_footer_branch
      %16 = sbr.rel target = $region3
    $region8: #{tpu_custom_call.1} parent=1 // loop_exit
      _
    %657 = vsyncpa [#allocation5], 1
    %s658 = scalar_lea.sflag [#allocation5], 1
    %659 = vsyncpa %s658, 1
    %660 = vsyncpa [#allocation10], 1
    %s661 = scalar_lea.sflag [#allocation10], 1
    %662 = vsyncpa %s661, 1
    %663 = vsyncpa [#allocation6], 1
    %s664 = scalar_lea.sflag [#allocation6], 1
    %665 = vsyncpa %s664, 1
    %666 = vsyncpa [#allocation7], 1
    %s667 = scalar_lea.sflag [#allocation7], 1
    %668 = vsyncpa %s667, 1

</llo_original>
